<compile_context>
chip_gen: v7x
topology: tpu7x:2x2x1
jax: 0.10.0
libtpu: 0.0.40
codegen_flags: <defaults>
</compile_context>

<pallas_src>
import numpy as np
import jax
import jax.numpy as jnp
from jax.experimental import pallas as pl
from jax.experimental.pallas import tpu as pltpu

_MIB = 1024 * 1024


def _round_up(x, m):
    return ((x + m - 1) // m) * m


def _cdiv(a, b):
    return -(-a // b)


def _balanced_tile(dim, cap, align):
    """Largest tile <= cap (multiple of align) minimizing waste in the last block."""
    cap = max(align, (cap // align) * align)
    if dim <= cap:
        return _round_up(dim, align)
    n_blocks = _cdiv(dim, cap)
    return min(cap, _round_up(_cdiv(dim, n_blocks), align))


# ---------------------------------------------------------------------------
# Kernels
# ---------------------------------------------------------------------------
def _linear_resident_kernel(x_ref, w_ref, b_ref, o_ref):
    """Single pass over x; whole (F, Cp) weight + bias stay resident in VMEM.

    x_ref: (TM, F)  compute_dtype
    w_ref: (F, Cp)  compute_dtype  (constant index_map -> fetched once)
    b_ref: (1, Cp)  float32        (constant index_map -> fetched once)
    o_ref: (TM, Cp) out_dtype
    """
    z = jnp.dot(x_ref[...], w_ref[...], preferred_element_type=jnp.float32)
    o_ref[...] = (z + b_ref[...]).astype(o_ref.dtype)


def _linear_kloop_kernel(x_ref, w_ref, b_ref, o_ref, acc_ref):
    """K-reduction fallback for weights too large to keep resident in VMEM.

    x_ref: (TM, TK), w_ref: (TK, TN) (pre-transposed, MXU-native),
    b_ref: (1, TN), o_ref: (TM, TN), acc_ref: f32 (TM, TN) scratch.
    """
    k = pl.program_id(2)

    @pl.when(k == 0)
    def _():
        acc_ref[...] = jnp.zeros_like(acc_ref)

    acc_ref[...] += jnp.dot(x_ref[...], w_ref[...],
                            preferred_element_type=jnp.float32)

    @pl.when(k == pl.num_programs(2) - 1)
    def _():
        o_ref[...] = (acc_ref[...] + b_ref[...]).astype(o_ref.dtype)


# ---------------------------------------------------------------------------
# Wrapper
# ---------------------------------------------------------------------------
def logistic_regression_forward(x, weight, bias, *,
                                compute_dtype=jnp.bfloat16,
                                tm=512, tn=512, tk=2048,
                                resident_weight_limit_bytes=16 * _MIB,
                                vmem_budget_bytes=48 * _MIB,
                                force_kloop=False):
    """Forward pass of LogisticRegression (logits only, matching the PyTorch module).

    x:      (B, F)  activations
    weight: (C, F)  PyTorch nn.Linear layout (transposed once here, outside the kernel)
    bias:   (C,)
    Returns (B, C) logits in x.dtype.  MXU inputs are `compute_dtype`
    (default bf16); accumulation and the bias add are f32.
    """
    B, F = x.shape
    C, F2 = weight.shape
    assert F == F2 and bias.shape == (C,)
    out_dtype = x.dtype
    cd = jnp.dtype(compute_dtype)
    cd_size = cd.itemsize
    out_size = jnp.dtype(out_dtype).itemsize

    B_orig = B
    if B < 8:  # tiny-batch guard: keep every block's row extent within the array
        x = jnp.pad(x, ((0, 8 - B), (0, 0)))
        B = 8

    # bf16 packs 16 rows per vreg; use 16-row alignment when B allows it.
    sub = 16 if (cd == jnp.dtype(jnp.bfloat16) and B >= 16) else 8
    Cp = _round_up(C, 128)  # lane-dense output / weight minor dim

    # Weight & bias prep (tiny vs x): cast -> transpose -> pad C.  (F, Cp) is the
    # MXU-native RHS layout (K on sublanes, N on lanes) -> no in-kernel transpose.
    wT = jnp.pad(weight.astype(cd).T, ((0, 0), (0, Cp - C)))
    bp = jnp.pad(bias.astype(jnp.float32), (0, Cp - C)).reshape(1, Cp)
    xc = x.astype(cd)  # x itself is never padded (no extra HBM pass)

    # Batch tile: balanced against waste, never taller than the array.
    TM = _balanced_tile(B, tm, sub)
    TM = min(TM, (B // sub) * sub)

    w_bytes = F * Cp * cd_size
    use_resident = (not force_kloop) and (w_bytes <= resident_weight_limit_bytes)

    if use_resident:
        # v7x megacore: give the single "parallel" axis >= 2 blocks when possible.
        if _cdiv(B, TM) == 1 and B >= 2 * sub:
            TM = min(_round_up(_cdiv(B, 2), sub), (B // sub) * sub)

        def vmem_est(tm_):
            return (2 * tm_ * F * cd_size      # x tiles (double-buffered)
                    + 2 * w_bytes              # resident weight (conservative x2)
                    + 2 * Cp * 4               # resident bias
                    + 2 * tm_ * Cp * out_size)  # output tiles

        while vmem_est(TM) > vmem_budget_bytes and TM > sub:
            TM = max(sub, _round_up(TM // 2, sub))
        if vmem_est(TM) > vmem_budget_bytes:
            use_resident = False  # even the smallest batch tile doesn't fit

    if use_resident:
        Bn = _cdiv(B, TM)
        cost = pl.CostEstimate(
            flops=2 * B * F * Cp,
            transcendentals=0,
            bytes_accessed=B * F * cd_size + w_bytes + Cp * 4 + B * Cp * out_size)
        out = pl.pallas_call(
            _linear_resident_kernel,
            out_shape=jax.ShapeDtypeStruct((B, Cp), out_dtype),
            grid=(Bn,),
            in_specs=[
                pl.BlockSpec((TM, F), lambda i: (i, 0)),   # x: streamed once
                pl.BlockSpec((F, Cp), lambda i: (0, 0)),   # W^T: resident, fetched once
                pl.BlockSpec((1, Cp), lambda i: (0, 0)),   # bias: resident
            ],
            out_specs=pl.BlockSpec((TM, Cp), lambda i: (i, 0)),
            compiler_params=pltpu.CompilerParams(
                dimension_semantics=("parallel",),
                vmem_limit_bytes=int(min(56 * _MIB,
                                         max(16 * _MIB, vmem_est(TM) + 4 * _MIB))),
            ),
            cost_estimate=cost,
        )(xc, wT, bp)
    else:
        # --- K-loop fallback: tile (B, C, F); F (contraction) padding is load-bearing. ---
        TN = _balanced_tile(Cp, tn, 128)
        TK = _balanced_tile(F, tk, 128)
        Fp = _round_up(F, TK)
        xc = jnp.pad(xc, ((0, 0), (0, Fp - F)))
        wT = jnp.pad(wT, ((0, Fp - F), (0, 0)))
        Bn, Cn, Kn = _cdiv(B, TM), _cdiv(Cp, TN), _cdiv(Fp, TK)

        est = (2 * TM * TK * cd_size + 2 * TK * TN * cd_size + 2 * TN * 4
               + 2 * TM * TN * out_size + TM * TN * 4)
        cost = pl.CostEstimate(
            flops=2 * B * Fp * Cp,
            transcendentals=0,
            bytes_accessed=(Cn * B * Fp * cd_size + Bn * Fp * Cp * cd_size
                            + Cp * 4 + B * Cp * out_size))
        out = pl.pallas_call(
            _linear_kloop_kernel,
            out_shape=jax.ShapeDtypeStruct((B, Cp), out_dtype),
            grid=(Bn, Cn, Kn),
            in_specs=[
                pl.BlockSpec((TM, TK), lambda i, j, k: (i, k)),
                pl.BlockSpec((TK, TN), lambda i, j, k: (k, j)),
                pl.BlockSpec((1, TN), lambda i, j, k: (0, j)),
            ],
            out_specs=pl.BlockSpec((TM, TN), lambda i, j, k: (i, j)),
            scratch_shapes=[pltpu.VMEM((TM, TN), jnp.float32)],
            compiler_params=pltpu.CompilerParams(
                dimension_semantics=("parallel", "parallel", "arbitrary"),
                vmem_limit_bytes=int(min(56 * _MIB,
                                         max(16 * _MIB, est + 4 * _MIB))),
            ),
            cost_estimate=cost,
        )(xc, wT, bp)

    if B_orig != B or Cp != C:
        out = out[:B_orig, :C]
    return out


def xavier_uniform(key, shape):
    # Matches torch.nn.init.xavier_uniform_ for a (fan_out, fan_in) weight.
    fan_out, fan_in = shape
    bound = np.sqrt(6.0 / (fan_in + fan_out))
    return jax.random.uniform(key, shape, jnp.float32, -bound, bound)


if __name__ == "__main__":
    num_features = 32
    num_classes = 16
    batch = 8

    key = jax.random.PRNGKey(0)
    k_x, k_w, k_b = jax.random.split(key, 3)

    x = jax.random.normal(k_x, (batch, num_features), jnp.float32)
    # Parameter init mirroring the module: xavier_uniform weight (C, F),
    # PyTorch-default bias U(-1/sqrt(fan_in), 1/sqrt(fan_in)).
    weight = xavier_uniform(k_w, (num_classes, num_features))
    b_bound = 1.0 / np.sqrt(num_features)
    bias = jax.random.uniform(k_b, (num_classes,), jnp.float32, -b_bound, b_bound)

    z_ref = x @ weight.T + bias

    # f32 compute (tight check), weight-resident single-pass path.
    z = logistic_regression_forward(x, weight, bias, compute_dtype=jnp.float32)
    jax.block_until_ready(z)
    np.testing.assert_allclose(np.asarray(z), np.asarray(z_ref), rtol=1e-5, atol=1e-5)

    # Default bf16 MXU inputs, f32 accumulation (loosened tolerance).
    z_bf16 = logistic_regression_forward(x, weight, bias)
    jax.block_until_ready(z_bf16)
    np.testing.assert_allclose(np.asarray(z_bf16), np.asarray(z_ref),
                               rtol=2e-2, atol=2e-2)

    # Larger, non-aligned case: multiple batch tiles (masked boundary block,
    # no x padding), padded/sliced class dim, resident-weight path.
    k2x, k2w, k2b = jax.random.split(jax.random.PRNGKey(1), 3)
    x2 = jax.random.normal(k2x, (40, 200), jnp.float32)
    w2 = xavier_uniform(k2w, (48, 200))
    b2 = jax.random.uniform(k2b, (48,), jnp.float32, -0.1, 0.1)
    z2_ref = x2 @ w2.T + b2

    z2 = logistic_regression_forward(x2, w2, b2, compute_dtype=jnp.float32)
    jax.block_until_ready(z2)
    np.testing.assert_allclose(np.asarray(z2), np.asarray(z2_ref), rtol=1e-4, atol=1e-4)

    # Exercise the K-loop fallback path (2 K steps, padded contraction axis).
    z3 = logistic_regression_forward(x2, w2, b2, compute_dtype=jnp.float32,
                                     force_kloop=True, tk=128)
    jax.block_until_ready(z3)
    np.testing.assert_allclose(np.asarray(z3), np.asarray(z2_ref), rtol=1e-4, atol=1e-4)

    print("KERNEL_OK")
</pallas_src>

<mosaic_0001>
module attributes {stable_mosaic.version = 11 : i64} {
  func.func @_linear_resident_kernel(%arg0: i32, %arg1: memref<8x32xf32, #tpu.memory_space<vmem>>, %arg2: memref<32x128xf32, #tpu.memory_space<vmem>>, %arg3: memref<1x128xf32, #tpu.memory_space<vmem>>, %arg4: memref<8x128xf32, #tpu.memory_space<vmem>>) attributes {dimension_semantics = [#tpu.dimension_semantics<parallel>], iteration_bounds = array<i64: 1>, scalar_prefetch = 0 : i64, scratch_operands = 0 : i64, tpu.core_type = #tpu.core_type<tc>, window_params = [{transform_indices = @transform_0, window_bounds = array<i64: 8, 32>}, {pipeline_mode = #tpu.pipeline_mode<synchronous>, transform_indices = @transform_1, window_bounds = array<i64: 32, 128>}, {pipeline_mode = #tpu.pipeline_mode<synchronous>, transform_indices = @transform_2, window_bounds = array<i64: 1, 128>}, {transform_indices = @transform_3, window_bounds = array<i64: 8, 128>}]} {
    %c0 = arith.constant 0 : index
    %c0_0 = arith.constant 0 : index
    %0 = vector.load %arg1[%c0, %c0_0] : memref<8x32xf32, #tpu.memory_space<vmem>>, vector<8x32xf32>
    %c0_1 = arith.constant 0 : index
    %c0_2 = arith.constant 0 : index
    %1 = vector.load %arg2[%c0_1, %c0_2] : memref<32x128xf32, #tpu.memory_space<vmem>>, vector<32x128xf32>
    %cst = arith.constant dense<0.000000e+00> : vector<8x128xf32>
    %2 = tpu.matmul %0, %1, %cst {dimension_numbers = #tpu.dot_dimension_numbers<[1], [0], [0], [1], [0, 0, 1, 1], [], []>} : vector<8x32xf32>, vector<32x128xf32>, vector<8x128xf32> -> vector<8x128xf32>
    %c0_3 = arith.constant 0 : index
    %c0_4 = arith.constant 0 : index
    %3 = vector.load %arg3[%c0_3, %c0_4] : memref<1x128xf32, #tpu.memory_space<vmem>>, vector<1x128xf32>
    %4 = vector.broadcast %3 : vector<1x128xf32> to vector<8x128xf32>
    %5 = arith.addf %2, %4 : vector<8x128xf32>
    %c0_5 = arith.constant 0 : index
    %c0_6 = arith.constant 0 : index
    %6 = vector.load %arg4[%c0_5, %c0_6] : memref<8x128xf32, #tpu.memory_space<vmem>>, vector<8x128xf32>
    tpu.vector_store %arg4[%c0_5, %c0_6], %5 {strides = array<i32>} : memref<8x128xf32, #tpu.memory_space<vmem>>, vector<8x128xf32>,
    return
  }
  func.func @transform_0(%arg0: i32) -> (i32, i32) {
    %c0_i32 = arith.constant 0 : i32
    %c0_i32_0 = arith.constant 0 : i32
    return %arg0, %c0_i32 : i32, i32
  }
  func.func @transform_1(%arg0: i32) -> (i32, i32) {
    %c0_i32 = arith.constant 0 : i32
    %c0_i32_0 = arith.constant 0 : i32
    %c0_i32_1 = arith.constant 0 : i32
    return %c0_i32, %c0_i32_0 : i32, i32
  }
  func.func @transform_2(%arg0: i32) -> (i32, i32) {
    %c0_i32 = arith.constant 0 : i32
    %c0_i32_0 = arith.constant 0 : i32
    %c0_i32_1 = arith.constant 0 : i32
    return %c0_i32, %c0_i32_0 : i32, i32
  }
  func.func @transform_3(%arg0: i32) -> (i32, i32) {
    %c0_i32 = arith.constant 0 : i32
    %c0_i32_0 = arith.constant 0 : i32
    return %arg0, %c0_i32 : i32, i32
  }
}

</mosaic_0001>

<llo_original>
// kernel: tpu_custom_call.1
$region0: #{tpu_custom_call.1}
  #allocation0 [shape = 'u32[]', space=smem, size = 0x4, offset = 0x4, fixed_abs, tag = 'smem constant byte address 0x4 - core index']
  #allocation1 [shape = 'u32[144,128]{1,0:T(1,128)}', space=vmem, size = 0x12000, scoped, tag = 'internal scratch']
  %s0 = inlined_call_operand.hbm [shape: f32[8,32], index: 0, kind: input, shape index: {}]
  %s1 = inlined_call_operand.hbm [shape: f32[32,128], index: 1, kind: input, shape index: {}]
  %s2 = inlined_call_operand.vmem [shape: f32[1,128], index: 2, kind: input, shape index: {}]
  %s3 = inlined_call_operand.hbm [shape: f32[8,128], index: 3, kind: output, shape index: {}]
  %s4 = sld [smem:[#allocation0]]
  $region30: #{tpu_custom_call.1} parent=0
    _
  %s6 = ssub.s32 1, %s4
  %s7 = scalar_select 0, %s6, %s4
  $region1: #{tpu_custom_call.1} parent=0
    #allocation2 [shape = 'u8[4096]{0}', space=vmem, size = 0x1000, scoped, tag = 'input window, operand 0, single buffered']
    #allocation3 [shape = 's32[1]{0}', space=sflag, size = 0x4, scoped, tag = 'scoped memory for tpu_custom_call.1']
    #allocation4 [shape = 's32[1]{0}', space=sflag, size = 0x4, scoped, tag = 'scoped memory for tpu_custom_call.1']
    #allocation5 [shape = 'u8[16384]{0}', space=vmem, size = 0x4000, scoped, tag = 'input window, operand 1, single buffered']
    #allocation6 [shape = 's32[1]{0}', space=sflag, size = 0x4, scoped, tag = 'scoped memory for tpu_custom_call.1']
    #allocation7 [shape = 'u8[4096]{0}', space=vmem, size = 0x1000, scoped, tag = 'output window, operand 0, single buffered']
    %8 = vsyncpa [#allocation3], 0
    %9 = vsyncpa [#allocation6], 0
    %10 = vsyncpa [#allocation4], 0
    // Predicated region
    $region2: #{tpu_custom_call.1} parent=1 // pred_check
      _
    $region3: #{tpu_custom_call.1} parent=1 // pred_check_branch
      %12 = sbr.rel (0) target = $region5
    $region4: #{tpu_custom_call.1} parent=1 // pred_region
      %s14 = ssub.s32 128, 128
      %15 = vsyncadd [#allocation3], %s14
      %s17 = sshll.u32 [#allocation2], 4
      %s18 = int_to_ptr.vmem [resolvable:$true] %s17
      %20 = dma.hbm_to_vmem [thread:$0]  %s0, 128, %s18, [#allocation3]
    $region5: #{tpu_custom_call.1} parent=1 // pred_fallthru
      _
    // Predicated region
    $region6: #{tpu_custom_call.1} parent=1 // pred_check
      _
    $region7: #{tpu_custom_call.1} parent=1 // pred_check_branch
      %22 = sbr.rel (0) target = $region9
    $region8: #{tpu_custom_call.1} parent=1 // pred_region
      %s24 = ssub.s32 512, 512
      %25 = vsyncadd [#allocation6], %s24
      %s26 = sshll.u32 [#allocation5], 4
      %s27 = int_to_ptr.vmem [resolvable:$true] %s26
      %32 = dma.hbm_to_vmem [thread:$0]  %s1, 512, %s27, [#allocation6], 128, 128, 8
    $region9: #{tpu_custom_call.1} parent=1 // pred_fallthru
      _
    // Predicated region
    $region10: #{tpu_custom_call.1} parent=1 // pred_check
      _
    $region11: #{tpu_custom_call.1} parent=1 // pred_check_branch
      %34 = sbr.rel (0) target = $region13
    $region12: #{tpu_custom_call.1} parent=1 // pred_region
      _
    $region13: #{tpu_custom_call.1} parent=1 // pred_fallthru
      _
    // Predicated region
    $region14: #{tpu_custom_call.1} parent=1 // pred_check
      _
    $region15: #{tpu_custom_call.1} parent=1 // pred_check_branch
      %36 = sbr.rel (0) target = $region17
    $region16: #{tpu_custom_call.1} parent=1 // pred_region
      %37 = dma.done [#allocation3], 128
    $region17: #{tpu_custom_call.1} parent=1 // pred_fallthru
      _
    // Predicated region
    $region18: #{tpu_custom_call.1} parent=1 // pred_check
      _
    $region19: #{tpu_custom_call.1} parent=1 // pred_check_branch
      %39 = sbr.rel (0) target = $region21
    $region20: #{tpu_custom_call.1} parent=1 // pred_region
      %40 = dma.done [#allocation6], 512
    $region21: #{tpu_custom_call.1} parent=1 // pred_fallthru
      _
    %v41 = vld [vmem:[#allocation2] sm:$0xff]
    %v42 = vld [vmem:[#allocation5] sm:$0xff]
    %v43 = vld [vmem:[#allocation5 + $0x8] sm:$0xff]
    %v44 = vld [vmem:[#allocation5 + $0x10] sm:$0xff]
    %v45 = vld [vmem:[#allocation5 + $0x18] sm:$0xff]
    %v46 = vld [vmem:[%s2] sm:$0x1]
    %v48 = vlaneseq
    %v49 = vshrl.u32 %v48, 7
    %v50 = vsub.s32 0, %v49
    %v51 = vrot.slane %v46, %v50
    %vm53 = vcmask 261120
    %v55 = vsel %vm53, %v41, 0
    %57 = vmatprep.subr.mxu0 0.0
    %58 = vmatpush1.msra.mxu0 %v42
    %59 = vmatprep.subr.mxu0 0.0
    %60 = vmatpush1.msra.mxu0 %v43
    %61 = vmatprep.subr.mxu0 0.0
    %62 = vmatpush1.msra.mxu0 %v44
    %63 = vmatprep.subr.mxu0 0.0
    %64 = vmatpush1.msra.mxu0 %v45
    %65 = vmatprep.subr.mxu0 0.0
    %66 = vmatpush1.msra.mxu0 0.0
    %67 = vmatprep.subr.mxu0 0.0
    %68 = vmatpush1.msra.mxu0 0.0
    %69 = vmatprep.subr.mxu0 0.0
    %70 = vmatpush1.msra.mxu0 0.0
    %71 = vmatprep.subr.mxu0 0.0
    %72 = vmatpush1.msra.mxu0 0.0
    %73 = vmatprep.subr.mxu0 0.0
    %74 = vmatpush1.msra.mxu0 0.0
    %75 = vmatprep.subr.mxu0 0.0
    %76 = vmatpush1.msra.mxu0 0.0
    %77 = vmatprep.subr.mxu0 0.0
    %78 = vmatpush1.msra.mxu0 0.0
    %79 = vmatprep.subr.mxu0 0.0
    %80 = vmatpush1.msra.mxu0 0.0
    %81 = vmatprep.subr.mxu0 0.0
    %82 = vmatpush1.msra.mxu0 0.0
    %83 = vmatprep.subr.mxu0 0.0
    %84 = vmatpush1.msra.mxu0 0.0
    %85 = vmatprep.subr.mxu0 0.0
    %86 = vmatpush1.msra.mxu0 0.0
    %87 = vmatprep.subr.mxu0 0.0
    %88 = vmatpush1.msra.mxu0 0.0
    %89 = vmatprep.subr.mxu0 0.0
    %90 = vmatpush1.msra.mxu0 0.0
    %91 = vmatprep.subr.mxu0 0.0
    %92 = vmatpush1.msra.mxu0 0.0
    %93 = vmatprep.subr.mxu0 0.0
    %94 = vmatpush1.msra.mxu0 0.0
    %95 = vmatprep.subr.mxu0 0.0
    %96 = vmatpush1.msra.mxu0 0.0
    %97 = vmatprep.subr.mxu0 0.0
    %98 = vmatpush1.msra.mxu0 0.0
    %99 = vmatprep.subr.mxu0 0.0
    %100 = vmatpush1.msra.mxu0 0.0
    %101 = vmatprep.subr.mxu0 0.0
    %102 = vmatpush1.msra.mxu0 0.0
    %103 = vmatprep.subr.mxu0 0.0
    %104 = vmatpush1.msra.mxu0 0.0
    %105 = vmatprep.subr.mxu0 0.0
    %106 = vmatpush1.msra.mxu0 0.0
    %107 = vmatprep.subr.mxu0 0.0
    %108 = vmatpush1.msra.mxu0 0.0
    %109 = vmatprep.subr.mxu0 0.0
    %110 = vmatpush1.msra.mxu0 0.0
    %111 = vmatprep.subr.mxu0 0.0
    %112 = vmatpush1.msra.mxu0 0.0
    %113 = vmatprep.subr.mxu0 0.0
    %114 = vmatpush1.msra.mxu0 0.0
    %115 = vmatprep.subr.mxu0 0.0
    %116 = vmatpush1.msra.mxu0 0.0
    %117 = vmatprep.subr.mxu0 0.0
    %118 = vmatpush1.msra.mxu0 0.0
    %119 = vmatprep.subr.mxu0 0.0
    %120 = vmatpush1.msra.mxu0 0.0
    %121 = vmatprep.mubr.f32.mxu0 0.0
    %122 = vmatmul.mubr.f32.gmra.mrb[0].mxu0 %v55
    %v123 = vpop.f32.mrb[0].mxu0
    %v124 = vadd.f32 %v51, %v123
    %v125 = vpop.f32.mrb[0].mxu0
    %126 = vdwg.mxu0
    %127 = vst [vmem:[#allocation7] sm:$0xff] %v124
    // Predicated region
    $region22: #{tpu_custom_call.1} parent=1 // pred_check
      _
    $region23: #{tpu_custom_call.1} parent=1 // pred_check_branch
      %129 = sbr.rel (0) target = $region25
    $region24: #{tpu_custom_call.1} parent=1 // pred_region
      %s131 = ssub.s32 128, 128
      %132 = vsyncadd [#allocation4], %s131
      %s134 = sshll.u32 [#allocation7], 4
      %s135 = int_to_ptr.vmem [resolvable:$true] %s134
      %137 = dma.vmem_to_hbm [thread:$0]  %s135, 128, %s3, [#allocation4]
    $region25: #{tpu_custom_call.1} parent=1 // pred_fallthru
      _
    // Predicated region
    $region26: #{tpu_custom_call.1} parent=1 // pred_check
      _
    $region27: #{tpu_custom_call.1} parent=1 // pred_check_branch
      %139 = sbr.rel (0) target = $region29
    $region28: #{tpu_custom_call.1} parent=1 // pred_region
      %140 = dma.done [#allocation4], 128
    $region29: #{tpu_custom_call.1} parent=1 // pred_fallthru
      _
    %141 = vsyncpa [#allocation3], 1
    %142 = vsyncpa [#allocation6], 1
    %143 = vsyncpa [#allocation4], 1

</llo_original>
